<compile_context>
chip_gen: v7x
topology: tpu7x:2x2x1
jax: 0.10.0
libtpu: 0.0.40
codegen_flags: <defaults>
</compile_context>

<pallas_src>
import jax
import jax.numpy as jnp
from jax.experimental import pallas as pl
from jax.experimental.pallas import tpu as pltpu


_SWEET_SPOT_BYTES = 2 * 1024 * 1024       # per-grid-step slab target (~1-2 MiB)
_MAX_NB = 8                               # images per step cap (v7x VMEM headroom)
_DEFAULT_VMEM_BUDGET = 40 * 1024 * 1024   # conservative vs. v7x's 64 MiB VMEM


def _sigmoid(z):
    # exp lands on the EUP slot; the approximate reciprocal keeps the divide
    # there too (off the VPU, off the serial path feeding the big scale
    # multiply).  Relative error of the fast reciprocal is tiny vs. an SE
    # gate in (0, 1).
    return pl.reciprocal(1.0 + jnp.exp(-z), approx=True)


# ---------------------------------------------------------------------------
# Path 1: fused single-pass kernel (pool + excite + scale), nb images / step.
# ---------------------------------------------------------------------------
def _se_fused_kernel(x_ref, w1_ref, b1_ref, w2_ref, b2_ref, o_ref):
    nb = x_ref.shape[0]
    for b in range(nb):                     # static unroll, nb <= _MAX_NB
        xb = x_ref[b]                       # (C, HW), native dtype
        # Squeeze: spatial mean with f32 accumulation (cheap lane reduce).
        pooled = jnp.mean(xb.astype(jnp.float32), axis=-1, keepdims=True)  # (C,1)
        # Excitation: two 1x1 convs == FC over channels.  Channels stay on
        # sublanes the whole way, so no transposes / relayouts are needed.
        s = jnp.dot(w1_ref[...], pooled,
                    preferred_element_type=jnp.float32) + b1_ref[...]      # (Cr,1)
        s = s * _sigmoid(s)                 # SiLU
        g = jnp.dot(w2_ref[...], s,
                    preferred_element_type=jnp.float32) + b2_ref[...]      # (C,1)
        gate = _sigmoid(g)                  # (C,1) f32
        # Scale in the activation dtype: avoids a full-slab f32 round-trip on
        # the store side (matters for bf16 activations on v6e/v7x).
        o_ref[b] = (xb * gate.astype(xb.dtype)).astype(o_ref.dtype)


def _pick_nb(batch, slab_bytes):
    """Images per grid step: DMA sweet spot, but keep >=2 grid steps (v7x 2 TCs)."""
    nb_cap = max(1, min(_MAX_NB, _SWEET_SPOT_BYTES // max(slab_bytes, 1)))
    if batch >= 2:
        nb_cap = min(nb_cap, batch // 2)    # never collapse the grid to 1 step
    nb_cap = int(max(1, min(nb_cap, batch)))
    for nb in range(nb_cap, 0, -1):
        if batch % nb == 0:                 # exact blocks, no padding
            return nb
    return 1


def _fused_vmem_need(nb, C, HW, itemsize, Cr):
    slab = nb * C * HW * itemsize
    xo_bufs = 2 * 2 * slab                  # x in + out, double-buffered
    f32_tmp = 2 * C * HW * 4                # f32 pooling / product temporaries
    w_bufs = 2 * 2 * Cr * C * 4             # w1 + w2, double-buffered
    b_bufs = 2 * (Cr + C) * 128 * 4         # (., 1) bias blocks pad to 128 lanes
    return xo_bufs + f32_tmp + w_bufs + b_bufs


def _vmem_limit(need_bytes):
    # >= the 32 MiB scoped default, <= a v7x-safe ceiling, always covers need.
    return int(min(max(2 * need_bytes, 32 << 20),
                   max(48 << 20, need_bytes + (8 << 20))))


def _se_fused(x3, w1f, b1c, w2f, b2c, nb, vmem_limit):
    N, C, HW = x3.shape
    Cr = w1f.shape[0]
    return pl.pallas_call(
        _se_fused_kernel,
        out_shape=jax.ShapeDtypeStruct((N, C, HW), x3.dtype),
        grid_spec=pltpu.PrefetchScalarGridSpec(
            num_scalar_prefetch=0,
            grid=(N // nb,),
            in_specs=[
                # HW is the lane axis; the full (C, HW) slab per image is kept
                # so the block always satisfies the (8, 128) rule.  When
                # HW % 128 != 0 (e.g. 7x7 = 49) stores are lane-masked.
                # TODO(synk): fold channel groups into the lane axis for such
                # geometries to get fully lane-dense stores.
                pl.BlockSpec((nb, C, HW), lambda n: (n, 0, 0)),   # x slab(s)
                pl.BlockSpec((Cr, C), lambda n: (0, 0)),          # w1 (resident)
                pl.BlockSpec((Cr, 1), lambda n: (0, 0)),          # b1
                pl.BlockSpec((C, Cr), lambda n: (0, 0)),          # w2 (resident)
                pl.BlockSpec((C, 1), lambda n: (0, 0)),           # b2
            ],
            out_specs=pl.BlockSpec((nb, C, HW), lambda n: (n, 0, 0)),
        ),
        compiler_params=pltpu.CompilerParams(
            dimension_semantics=("parallel",),     # batch steps -> v7x 2 TCs
            vmem_limit_bytes=vmem_limit,
        ),
    )(x3, w1f, b1c, w2f, b2c)


# ---------------------------------------------------------------------------
# Path 2: two-pass fallback for slabs that do not fit VMEM.
# ---------------------------------------------------------------------------
def _pool_kernel(x_ref, pooled_ref):
    pooled_ref[0] = jnp.mean(x_ref[0].astype(jnp.float32), axis=-1, keepdims=True)


def _excite_kernel(pooled_ref, w1_ref, b1_ref, w2_ref, b2_ref, gate_ref):
    p = pooled_ref[0]                                                   # (C, 1)
    s = jnp.dot(w1_ref[...], p, preferred_element_type=jnp.float32) + b1_ref[...]
    s = s * _sigmoid(s)
    g = jnp.dot(w2_ref[...], s, preferred_element_type=jnp.float32) + b2_ref[...]
    gate_ref[0] = _sigmoid(g)


def _scale_kernel(x_ref, gate_ref, o_ref):
    xb = x_ref[0]                                                       # (tc, HW)
    o_ref[0] = (xb * gate_ref[0].astype(xb.dtype)).astype(o_ref.dtype)


def _se_two_pass(x3, w1f, b1c, w2f, b2c, budget):
    N, C, HW = x3.shape
    Cr = w1f.shape[0]
    itemsize = jnp.dtype(x3.dtype).itemsize

    # Channel-chunk size: sweet-spot sized blocks that also fit the budget
    # (2 in + 2 out double buffers + f32 temps ~ 6 slabs worth).  Chunking
    # channels (not HW) keeps the lane axis at the full HW extent, so the
    # (8, 128) rule holds for any spatial size and the pool reduction never
    # mixes padded garbage into valid channels.
    per_row = HW * itemsize
    tc_cap = min(C,
                 _SWEET_SPOT_BYTES // max(per_row, 1),
                 max(budget, 6 * per_row) // (6 * max(per_row, 1)))
    tc_cap = int(max(1, tc_cap))
    tc = C if tc_cap >= C else max(8, (tc_cap // 8) * 8)   # sublane-aligned
    n_c = pl.cdiv(C, tc)
    chunk_need = 6 * tc * HW * max(itemsize, 4) + 2 * (Cr + C) * 128 * 4
    vlim = _vmem_limit(chunk_need)

    # Pass 1: per-channel global average pool, channel-chunked.
    pooled = pl.pallas_call(
        _pool_kernel,
        out_shape=jax.ShapeDtypeStruct((N, C, 1), jnp.float32),
        grid_spec=pltpu.PrefetchScalarGridSpec(
            num_scalar_prefetch=0,
            grid=(N, n_c),
            in_specs=[pl.BlockSpec((1, tc, HW), lambda n, c: (n, c, 0))],
            out_specs=pl.BlockSpec((1, tc, 1), lambda n, c: (n, c, 0)),
        ),
        compiler_params=pltpu.CompilerParams(
            dimension_semantics=("parallel", "parallel"),
            vmem_limit_bytes=vlim,
        ),
    )(x3)

    # Tiny excitation MLP: pooled -> gate (one image per step, all in f32).
    gate = pl.pallas_call(
        _excite_kernel,
        out_shape=jax.ShapeDtypeStruct((N, C, 1), jnp.float32),
        grid_spec=pltpu.PrefetchScalarGridSpec(
            num_scalar_prefetch=0,
            grid=(N,),
            in_specs=[
                pl.BlockSpec((1, C, 1), lambda n: (n, 0, 0)),
                pl.BlockSpec((Cr, C), lambda n: (0, 0)),
                pl.BlockSpec((Cr, 1), lambda n: (0, 0)),
                pl.BlockSpec((C, Cr), lambda n: (0, 0)),
                pl.BlockSpec((C, 1), lambda n: (0, 0)),
            ],
            out_specs=pl.BlockSpec((1, C, 1), lambda n: (n, 0, 0)),
        ),
        compiler_params=pltpu.CompilerParams(
            dimension_semantics=("parallel",),
            vmem_limit_bytes=_vmem_limit(4 * Cr * C * 4 + 2 * (Cr + C) * 128 * 4),
        ),
    )(pooled, w1f, b1c, w2f, b2c)

    # Pass 2: channel-wise rescale, channel-chunked.
    return pl.pallas_call(
        _scale_kernel,
        out_shape=jax.ShapeDtypeStruct((N, C, HW), x3.dtype),
        grid_spec=pltpu.PrefetchScalarGridSpec(
            num_scalar_prefetch=0,
            grid=(N, n_c),
            in_specs=[
                pl.BlockSpec((1, tc, HW), lambda n, c: (n, c, 0)),
                pl.BlockSpec((1, tc, 1), lambda n, c: (n, c, 0)),
            ],
            out_specs=pl.BlockSpec((1, tc, HW), lambda n, c: (n, c, 0)),
        ),
        compiler_params=pltpu.CompilerParams(
            dimension_semantics=("parallel", "parallel"),
            vmem_limit_bytes=vlim,
        ),
    )(x3, gate)


# ---------------------------------------------------------------------------
# Public entry point.
# ---------------------------------------------------------------------------
def se_block(x, w1, b1, w2, b2, *, vmem_budget_bytes=None):
    """SEBlock forward.

    x:  (N, C, H, W) activations (f32 or bf16)
    w1: (Cr, C)  1x1 conv #1 weight (out, in), kernel dims squeezed
    b1: (Cr,)
    w2: (C, Cr)  1x1 conv #2 weight
    b2: (C,)
    vmem_budget_bytes: optional override of the per-step VMEM budget used to
        pick between the fused path and the two-pass fallback (tests only).
    """
    N, C, H, W = x.shape
    Cr = w1.shape[0]
    HW = H * W
    itemsize = jnp.dtype(x.dtype).itemsize

    x3 = x.reshape(N, C, HW)                # contiguous view, no copy
    w1f = w1.astype(jnp.float32)
    w2f = w2.astype(jnp.float32)
    b1c = b1.reshape(Cr, 1).astype(jnp.float32)
    b2c = b2.reshape(C, 1).astype(jnp.float32)

    budget = (_DEFAULT_VMEM_BUDGET if vmem_budget_bytes is None
              else int(vmem_budget_bytes))

    slab_bytes = C * HW * itemsize
    nb = _pick_nb(N, slab_bytes)
    while nb > 1 and _fused_vmem_need(nb, C, HW, itemsize, Cr) > budget:
        nb -= 1
        while nb > 1 and N % nb != 0:
            nb -= 1

    need = _fused_vmem_need(nb, C, HW, itemsize, Cr)
    if need <= budget:
        out3 = _se_fused(x3, w1f, b1c, w2f, b2c, nb, _vmem_limit(need))
    else:
        # Slab too large for single-pass VMEM residency (B4/B7-scale inputs).
        out3 = _se_two_pass(x3, w1f, b1c, w2f, b2c, budget)

    return out3.reshape(N, C, H, W)


if __name__ == "__main__":
    key = jax.random.PRNGKey(0)
    k1, k2, k3, k4, k5 = jax.random.split(key, 5)

    # Small shapes consistent with an EfficientNet SE site (HW lane-dense).
    N, C, H, W = 4, 64, 16, 16
    reduction_ratio = 16
    Cr = C // reduction_ratio               # 4

    x = jax.random.normal(k1, (N, C, H, W), dtype=jnp.float32)
    w1 = jax.random.normal(k2, (Cr, C), dtype=jnp.float32) * 0.1
    b1 = jax.random.normal(k3, (Cr,), dtype=jnp.float32) * 0.1
    w2 = jax.random.normal(k4, (C, Cr), dtype=jnp.float32) * 0.1
    b2 = jax.random.normal(k5, (C,), dtype=jnp.float32) * 0.1

    # Pure-JAX reference mirroring the PyTorch SEBlock forward.
    pooled = jnp.mean(x, axis=(2, 3))       # AdaptiveAvgPool2d(1)
    s = pooled @ w1.T + b1                  # 1x1 conv #1
    s = s * jax.nn.sigmoid(s)               # SiLU
    g = s @ w2.T + b2                       # 1x1 conv #2
    y_ref = x * jax.nn.sigmoid(g)[:, :, None, None]

    # Tolerance covers the EUP approximate reciprocal inside the sigmoid
    # (<~1e-3 relative on the gate); real layout/math bugs show up as O(0.1+).
    TOL = dict(atol=1e-2, rtol=1e-2)

    # Fused single-pass path (nb = 2 images per grid step, grid of 2 steps).
    y = se_block(x, w1, b1, w2, b2)
    jax.block_until_ready(y)
    assert y.shape == x.shape and y.dtype == x.dtype
    assert jnp.allclose(y, y_ref, **TOL), float(jnp.max(jnp.abs(y - y_ref)))

    # Two-pass fallback path, forced via a tiny VMEM budget so the
    # channel-chunked pool / scale kernels are exercised too.
    y2 = se_block(x, w1, b1, w2, b2, vmem_budget_bytes=128 * 1024)
    jax.block_until_ready(y2)
    assert y2.shape == x.shape and y2.dtype == x.dtype
    assert jnp.allclose(y2, y_ref, **TOL), float(jnp.max(jnp.abs(y2 - y_ref)))

    print("KERNEL_OK")
</pallas_src>

<mosaic_0001>
module attributes {stable_mosaic.version = 11 : i64} {
  func.func @_se_fused_kernel(%arg0: i32, %arg1: memref<2x64x256xf32, #tpu.memory_space<vmem>>, %arg2: memref<4x64xf32, #tpu.memory_space<vmem>>, %arg3: memref<4x1xf32, #tpu.memory_space<vmem>>, %arg4: memref<64x4xf32, #tpu.memory_space<vmem>>, %arg5: memref<64x1xf32, #tpu.memory_space<vmem>>, %arg6: memref<2x64x256xf32, #tpu.memory_space<vmem>>) attributes {dimension_semantics = [#tpu.dimension_semantics<parallel>], iteration_bounds = array<i64: 2>, scalar_prefetch = 0 : i64, scratch_operands = 0 : i64, tpu.core_type = #tpu.core_type<tc>, window_params = [{transform_indices = @transform_0, window_bounds = array<i64: 2, 64, 256>}, {pipeline_mode = #tpu.pipeline_mode<synchronous>, transform_indices = @transform_1, window_bounds = array<i64: 4, 64>}, {pipeline_mode = #tpu.pipeline_mode<synchronous>, transform_indices = @transform_2, window_bounds = array<i64: 4, 1>}, {pipeline_mode = #tpu.pipeline_mode<synchronous>, transform_indices = @transform_3, window_bounds = array<i64: 64, 4>}, {pipeline_mode = #tpu.pipeline_mode<synchronous>, transform_indices = @transform_4, window_bounds = array<i64: 64, 1>}, {transform_indices = @transform_5, window_bounds = array<i64: 2, 64, 256>}]} {
    %c0 = arith.constant 0 : index
    %c0_0 = arith.constant 0 : index
    %c0_1 = arith.constant 0 : index
    %0 = vector.load %arg1[%c0, %c0_0, %c0_1] : memref<2x64x256xf32, #tpu.memory_space<vmem>>, vector<1x64x256xf32>
    %1 = vector.shape_cast %0 : vector<1x64x256xf32> to vector<64x256xf32>
    %cst = arith.constant dense<0.000000e+00> : vector<64xf32>
    %2 = vector.multi_reduction <add>, %1, %cst [1] : vector<64x256xf32> to vector<64xf32>
    %3 = vector.shape_cast %2 : vector<64xf32> to vector<64x1xf32>
    %cst_2 = arith.constant 2.560000e+02 : f32
    %4 = vector.broadcast %cst_2 : f32 to vector<64x1xf32>
    %5 = arith.divf %3, %4 : vector<64x1xf32>
    %c0_3 = arith.constant 0 : index
    %c0_4 = arith.constant 0 : index
    %6 = vector.load %arg2[%c0_3, %c0_4] : memref<4x64xf32, #tpu.memory_space<vmem>>, vector<4x64xf32>
    %cst_5 = arith.constant dense<0.000000e+00> : vector<4x1xf32>
    %7 = tpu.matmul %6, %5, %cst_5 {dimension_numbers = #tpu.dot_dimension_numbers<[1], [0], [0], [1], [0, 0, 1, 1], [], []>} : vector<4x64xf32>, vector<64x1xf32>, vector<4x1xf32> -> vector<4x1xf32>
    %c0_6 = arith.constant 0 : index
    %c0_7 = arith.constant 0 : index
    %8 = vector.load %arg3[%c0_6, %c0_7] : memref<4x1xf32, #tpu.memory_space<vmem>>, vector<4x1xf32>
    %9 = arith.addf %7, %8 : vector<4x1xf32>
    %cst_8 = arith.constant 0.000000e+00 : f32
    %10 = vector.broadcast %cst_8 : f32 to vector<4x1xf32>
    %11 = arith.subf %10, %9 : vector<4x1xf32>
    %12 = math.exp %11 : vector<4x1xf32>
    %cst_9 = arith.constant 1.000000e+00 : f32
    %13 = vector.broadcast %cst_9 : f32 to vector<4x1xf32>
    %14 = arith.addf %13, %12 : vector<4x1xf32>
    %15 = tpu.reciprocal %14 {approx = true} : vector<4x1xf32> -> vector<4x1xf32>
    %16 = arith.mulf %9, %15 : vector<4x1xf32>
    %c0_10 = arith.constant 0 : index
    %c0_11 = arith.constant 0 : index
    %17 = vector.load %arg4[%c0_10, %c0_11] : memref<64x4xf32, #tpu.memory_space<vmem>>, vector<64x4xf32>
    %cst_12 = arith.constant dense<0.000000e+00> : vector<64x1xf32>
    %18 = tpu.matmul %17, %16, %cst_12 {dimension_numbers = #tpu.dot_dimension_numbers<[1], [0], [0], [1], [0, 0, 1, 1], [], []>} : vector<64x4xf32>, vector<4x1xf32>, vector<64x1xf32> -> vector<64x1xf32>
    %c0_13 = arith.constant 0 : index
    %c0_14 = arith.constant 0 : index
    %19 = vector.load %arg5[%c0_13, %c0_14] : memref<64x1xf32, #tpu.memory_space<vmem>>, vector<64x1xf32>
    %20 = arith.addf %18, %19 : vector<64x1xf32>
    %cst_15 = arith.constant 0.000000e+00 : f32
    %21 = vector.broadcast %cst_15 : f32 to vector<64x1xf32>
    %22 = arith.subf %21, %20 : vector<64x1xf32>
    %23 = math.exp %22 : vector<64x1xf32>
    %cst_16 = arith.constant 1.000000e+00 : f32
    %24 = vector.broadcast %cst_16 : f32 to vector<64x1xf32>
    %25 = arith.addf %24, %23 : vector<64x1xf32>
    %26 = tpu.reciprocal %25 {approx = true} : vector<64x1xf32> -> vector<64x1xf32>
    %27 = vector.broadcast %26 : vector<64x1xf32> to vector<64x256xf32>
    %28 = arith.mulf %1, %27 : vector<64x256xf32>
    %c0_17 = arith.constant 0 : index
    %c0_18 = arith.constant 0 : index
    %c0_19 = arith.constant 0 : index
    %29 = vector.load %arg6[%c0_17, %c0_18, %c0_19] : memref<2x64x256xf32, #tpu.memory_space<vmem>>, vector<1x64x256xf32>
    %30 = vector.shape_cast %29 : vector<1x64x256xf32> to vector<64x256xf32>
    %31 = vector.shape_cast %28 : vector<64x256xf32> to vector<1x64x256xf32>
    tpu.vector_store %arg6[%c0_17, %c0_18, %c0_19], %31 {strides = array<i32>} : memref<2x64x256xf32, #tpu.memory_space<vmem>>, vector<1x64x256xf32>,
    %c1 = arith.constant 1 : index
    %c0_20 = arith.constant 0 : index
    %c0_21 = arith.constant 0 : index
    %32 = vector.load %arg1[%c1, %c0_20, %c0_21] : memref<2x64x256xf32, #tpu.memory_space<vmem>>, vector<1x64x256xf32>
    %33 = vector.shape_cast %32 : vector<1x64x256xf32> to vector<64x256xf32>
    %cst_22 = arith.constant dense<0.000000e+00> : vector<64xf32>
    %34 = vector.multi_reduction <add>, %33, %cst_22 [1] : vector<64x256xf32> to vector<64xf32>
    %35 = vector.shape_cast %34 : vector<64xf32> to vector<64x1xf32>
    %cst_23 = arith.constant 2.560000e+02 : f32
    %36 = vector.broadcast %cst_23 : f32 to vector<64x1xf32>
    %37 = arith.divf %35, %36 : vector<64x1xf32>
    %c0_24 = arith.constant 0 : index
    %c0_25 = arith.constant 0 : index
    %38 = vector.load %arg2[%c0_24, %c0_25] : memref<4x64xf32, #tpu.memory_space<vmem>>, vector<4x64xf32>
    %cst_26 = arith.constant dense<0.000000e+00> : vector<4x1xf32>
    %39 = tpu.matmul %38, %37, %cst_26 {dimension_numbers = #tpu.dot_dimension_numbers<[1], [0], [0], [1], [0, 0, 1, 1], [], []>} : vector<4x64xf32>, vector<64x1xf32>, vector<4x1xf32> -> vector<4x1xf32>
    %c0_27 = arith.constant 0 : index
    %c0_28 = arith.constant 0 : index
    %40 = vector.load %arg3[%c0_27, %c0_28] : memref<4x1xf32, #tpu.memory_space<vmem>>, vector<4x1xf32>
    %41 = arith.addf %39, %40 : vector<4x1xf32>
    %cst_29 = arith.constant 0.000000e+00 : f32
    %42 = vector.broadcast %cst_29 : f32 to vector<4x1xf32>
    %43 = arith.subf %42, %41 : vector<4x1xf32>
    %44 = math.exp %43 : vector<4x1xf32>
    %cst_30 = arith.constant 1.000000e+00 : f32
    %45 = vector.broadcast %cst_30 : f32 to vector<4x1xf32>
    %46 = arith.addf %45, %44 : vector<4x1xf32>
    %47 = tpu.reciprocal %46 {approx = true} : vector<4x1xf32> -> vector<4x1xf32>
    %48 = arith.mulf %41, %47 : vector<4x1xf32>
    %c0_31 = arith.constant 0 : index
    %c0_32 = arith.constant 0 : index
    %49 = vector.load %arg4[%c0_31, %c0_32] : memref<64x4xf32, #tpu.memory_space<vmem>>, vector<64x4xf32>
    %cst_33 = arith.constant dense<0.000000e+00> : vector<64x1xf32>
    %50 = tpu.matmul %49, %48, %cst_33 {dimension_numbers = #tpu.dot_dimension_numbers<[1], [0], [0], [1], [0, 0, 1, 1], [], []>} : vector<64x4xf32>, vector<4x1xf32>, vector<64x1xf32> -> vector<64x1xf32>
    %c0_34 = arith.constant 0 : index
    %c0_35 = arith.constant 0 : index
    %51 = vector.load %arg5[%c0_34, %c0_35] : memref<64x1xf32, #tpu.memory_space<vmem>>, vector<64x1xf32>
    %52 = arith.addf %50, %51 : vector<64x1xf32>
    %cst_36 = arith.constant 0.000000e+00 : f32
    %53 = vector.broadcast %cst_36 : f32 to vector<64x1xf32>
    %54 = arith.subf %53, %52 : vector<64x1xf32>
    %55 = math.exp %54 : vector<64x1xf32>
    %cst_37 = arith.constant 1.000000e+00 : f32
    %56 = vector.broadcast %cst_37 : f32 to vector<64x1xf32>
    %57 = arith.addf %56, %55 : vector<64x1xf32>
    %58 = tpu.reciprocal %57 {approx = true} : vector<64x1xf32> -> vector<64x1xf32>
    %59 = vector.broadcast %58 : vector<64x1xf32> to vector<64x256xf32>
    %60 = arith.mulf %33, %59 : vector<64x256xf32>
    %c1_38 = arith.constant 1 : index
    %c0_39 = arith.constant 0 : index
    %c0_40 = arith.constant 0 : index
    %61 = vector.load %arg6[%c1_38, %c0_39, %c0_40] : memref<2x64x256xf32, #tpu.memory_space<vmem>>, vector<1x64x256xf32>
    %62 = vector.shape_cast %61 : vector<1x64x256xf32> to vector<64x256xf32>
    %63 = vector.shape_cast %60 : vector<64x256xf32> to vector<1x64x256xf32>
    tpu.vector_store %arg6[%c1_38, %c0_39, %c0_40], %63 {strides = array<i32>} : memref<2x64x256xf32, #tpu.memory_space<vmem>>, vector<1x64x256xf32>,
    return
  }
  func.func @transform_0(%arg0: i32) -> (i32, i32, i32) {
    %c0_i32 = arith.constant 0 : i32
    %c0_i32_0 = arith.constant 0 : i32
    %c0_i32_1 = arith.constant 0 : i32
    return %arg0, %c0_i32, %c0_i32_0 : i32, i32, i32
  }
  func.func @transform_1(%arg0: i32) -> (i32, i32) {
    %c0_i32 = arith.constant 0 : i32
    %c0_i32_0 = arith.constant 0 : i32
    %c0_i32_1 = arith.constant 0 : i32
    return %c0_i32, %c0_i32_0 : i32, i32
  }
  func.func @transform_2(%arg0: i32) -> (i32, i32) {
    %c0_i32 = arith.constant 0 : i32
    %c0_i32_0 = arith.constant 0 : i32
    %c0_i32_1 = arith.constant 0 : i32
    return %c0_i32, %c0_i32_0 : i32, i32
  }
  func.func @transform_3(%arg0: i32) -> (i32, i32) {
    %c0_i32 = arith.constant 0 : i32
    %c0_i32_0 = arith.constant 0 : i32
    %c0_i32_1 = arith.constant 0 : i32
    return %c0_i32, %c0_i32_0 : i32, i32
  }
  func.func @transform_4(%arg0: i32) -> (i32, i32) {
    %c0_i32 = arith.constant 0 : i32
    %c0_i32_0 = arith.constant 0 : i32
    %c0_i32_1 = arith.constant 0 : i32
    return %c0_i32, %c0_i32_0 : i32, i32
  }
  func.func @transform_5(%arg0: i32) -> (i32, i32, i32) {
    %c0_i32 = arith.constant 0 : i32
    %c0_i32_0 = arith.constant 0 : i32
    %c0_i32_1 = arith.constant 0 : i32
    return %arg0, %c0_i32, %c0_i32_0 : i32, i32, i32
  }
}

</mosaic_0001>

<llo_original>
// kernel: tpu_custom_call.1
$region0: #{tpu_custom_call.1}
  #allocation0 [shape = 'u32[]', space=smem, size = 0x4, offset = 0x4, fixed_abs, tag = 'smem constant byte address 0x4 - core index']
  #allocation1 [shape = 'u32[144,128]{1,0:T(1,128)}', space=vmem, size = 0x12000, scoped, tag = 'internal scratch']
  %s0 = inlined_call_operand.hbm [shape: f32[4,64,256], index: 0, kind: input, shape index: {}]
  %s1 = inlined_call_operand.vmem [shape: f32[4,64], index: 1, kind: input, shape index: {}]
  %s2 = inlined_call_operand.vmem [shape: f32[4,1], index: 2, kind: input, shape index: {}]
  %s3 = inlined_call_operand.vmem [shape: f32[64,4], index: 3, kind: input, shape index: {}]
  %s4 = inlined_call_operand.vmem [shape: f32[64,1], index: 4, kind: input, shape index: {}]
  %s5 = inlined_call_operand.hbm [shape: f32[4,64,256], index: 5, kind: output, shape index: {}]
  %s6 = sld [smem:[#allocation0]]
  $region57: #{tpu_custom_call.1} parent=0
    _
  %s8 = ssub.s32 1, %s6
  %s9 = scalar_select 0, %s8, %s6
  $region1: #{tpu_custom_call.1} parent=0
    #allocation2 [shape = 'u8[262144]{0}', space=vmem, size = 0x40000, scoped, tag = 'input window, operand 0']
    #allocation3 [shape = 's32[2]{0}', space=sflag, size = 0x8, scoped, tag = 'scoped memory for tpu_custom_call.1']
    #allocation4 [shape = 's32[2]{0}', space=sflag, size = 0x8, scoped, tag = 'scoped memory for tpu_custom_call.1']
    #allocation5 [shape = 'u8[262144]{0}', space=vmem, size = 0x40000, scoped, tag = 'output window, operand 0']
    %10 = vsyncpa [#allocation3], 0
    %s11 = scalar_lea.sflag [#allocation3], 1
    %12 = vsyncpa %s11, 0
    %13 = vsyncpa [#allocation4], 0
    %s14 = scalar_lea.sflag [#allocation4], 1
    %15 = vsyncpa %s14, 0
    loop: start=0, step=1, limit=4
    $region2: #{tpu_custom_call.1} parent=1 // loop_pre_header
      _
    $region3: #{tpu_custom_call.1} parent=1 // loop_header
      %s17 = sphi 0, %s21
      %p18 = scmp.ge.s32.totalorder %s17, 4
      %s27 = sphi 0, %s29
      %s30 = sphi 0, %s27
      %s31 = sphi 0, %s30
      %s47 = sphi 0, %s31
      %s51 = sphi 0, %s51
      %s53 = sphi 0, %s51
      %s54 = sphi 0, %s53
      %s68 = sphi 0, %s54
      %s72 = sphi 0, %s72
      %s74 = sphi 0, %s72
      %s75 = sphi 0, %s74
      %s89 = sphi 0, %s75
      %s93 = sphi 0, %s93
      %s95 = sphi 0, %s93
      %s96 = sphi 0, %s95
      %s110 = sphi 0, %s96
      %s114 = sphi 0, %s114
      %s116 = sphi 0, %s114
      %s117 = sphi 0, %s116
      %s131 = sphi 0, %s117
      %s137 = sphi 0, %s139
      %s140 = sphi 0, %s137
      %s141 = sphi 0, %s140
      %s157 = sphi 0, %s141
    $region4: #{tpu_custom_call.1} parent=1 // loop_header_branch
      %20 = sbr.rel (%p18) target = $region8
    $region5: #{tpu_custom_call.1} parent=1 // loop_body
      %s22 = ssub.s32 %s17, 1
      %s23 = ssub.s32 %s17, 2
      %s24 = sadd.s32 %s17, 1
      %s25 = ssub.s32 %s17, %s24
      %p26 = scmp.eq.s32.totalorder %s25, 0
      %s28 = sadd.s32 %s27, 1
      %s29 = scalar_select %p26, %s27, %s28
      %p32 = pneg %p26
      %p33 = scmp.eq.s32.totalorder %s17, 1
      %p34 = por %p32, %p33
      %p35 = scmp.ne.s32.totalorder %s27, %s30
      %p36 = scmp.eq.s32.totalorder %s17, 0
      %p37 = por %p35, %p36
      %p38 = scmp.ne.s32.totalorder %s27, %s30
      %p39 = scmp.eq.s32.totalorder %s22, 1
      %p40 = por %p38, %p39
      %p41 = scmp.ne.s32.totalorder %s30, %s31
      %p42 = scmp.eq.s32.totalorder %s22, 0
      %p43 = por %p41, %p42
      %p44 = scmp.ne.s32.totalorder %s30, %s31
      %p45 = scmp.eq.s32.totalorder %s23, 1
      %p46 = por %p44, %p45
      %p48 = scmp.ne.s32.totalorder %s31, %s47
      %p49 = scmp.eq.s32.totalorder %s23, 0
      %p50 = por %p48, %p49
      %s52 = sadd.s32 %s51, 1
      %p55 = scmp.eq.s32.totalorder %s17, 1
      %p56 = scmp.ne.s32.totalorder %s51, %s53
      %p57 = scmp.eq.s32.totalorder %s17, 0
      %p58 = por %p56, %p57
      %p59 = scmp.ne.s32.totalorder %s51, %s53
      %p60 = scmp.eq.s32.totalorder %s22, 1
      %p61 = por %p59, %p60
      %p62 = scmp.ne.s32.totalorder %s53, %s54
      %p63 = scmp.eq.s32.totalorder %s22, 0
      %p64 = por %p62, %p63
      %p65 = scmp.ne.s32.totalorder %s53, %s54
      %p66 = scmp.eq.s32.totalorder %s23, 1
      %p67 = por %p65, %p66
      %p69 = scmp.ne.s32.totalorder %s54, %s68
      %p70 = scmp.eq.s32.totalorder %s23, 0
      %p71 = por %p69, %p70
      %s73 = sadd.s32 %s72, 1
      %p76 = scmp.eq.s32.totalorder %s17, 1
      %p77 = scmp.ne.s32.totalorder %s72, %s74
      %p78 = scmp.eq.s32.totalorder %s17, 0
      %p79 = por %p77, %p78
      %p80 = scmp.ne.s32.totalorder %s72, %s74
      %p81 = scmp.eq.s32.totalorder %s22, 1
      %p82 = por %p80, %p81
      %p83 = scmp.ne.s32.totalorder %s74, %s75
      %p84 = scmp.eq.s32.totalorder %s22, 0
      %p85 = por %p83, %p84
      %p86 = scmp.ne.s32.totalorder %s74, %s75
      %p87 = scmp.eq.s32.totalorder %s23, 1
      %p88 = por %p86, %p87
      %p90 = scmp.ne.s32.totalorder %s75, %s89
      %p91 = scmp.eq.s32.totalorder %s23, 0
      %p92 = por %p90, %p91
      %s94 = sadd.s32 %s93, 1
      %p97 = scmp.eq.s32.totalorder %s17, 1
      %p98 = scmp.ne.s32.totalorder %s93, %s95
      %p99 = scmp.eq.s32.totalorder %s17, 0
      %p100 = por %p98, %p99
      %p101 = scmp.ne.s32.totalorder %s93, %s95
      %p102 = scmp.eq.s32.totalorder %s22, 1
      %p103 = por %p101, %p102
      %p104 = scmp.ne.s32.totalorder %s95, %s96
      %p105 = scmp.eq.s32.totalorder %s22, 0
      %p106 = por %p104, %p105
      %p107 = scmp.ne.s32.totalorder %s95, %s96
      %p108 = scmp.eq.s32.totalorder %s23, 1
      %p109 = por %p107, %p108
      %p111 = scmp.ne.s32.totalorder %s96, %s110
      %p112 = scmp.eq.s32.totalorder %s23, 0
      %p113 = por %p111, %p112
      %s115 = sadd.s32 %s114, 1
      %p118 = scmp.eq.s32.totalorder %s17, 1
      %p119 = scmp.ne.s32.totalorder %s114, %s116
      %p120 = scmp.eq.s32.totalorder %s17, 0
      %p121 = por %p119, %p120
      %p122 = scmp.ne.s32.totalorder %s114, %s116
      %p123 = scmp.eq.s32.totalorder %s22, 1
      %p124 = por %p122, %p123
      %p125 = scmp.ne.s32.totalorder %s116, %s117
      %p126 = scmp.eq.s32.totalorder %s22, 0
      %p127 = por %p125, %p126
      %p128 = scmp.ne.s32.totalorder %s116, %s117
      %p129 = scmp.eq.s32.totalorder %s23, 1
      %p130 = por %p128, %p129
      %p132 = scmp.ne.s32.totalorder %s117, %s131
      %p133 = scmp.eq.s32.totalorder %s23, 0
      %p134 = por %p132, %p133
      %s135 = ssub.s32 %s17, %s24
      %p136 = scmp.eq.s32.totalorder %s135, 0
      %s138 = sadd.s32 %s137, 1
      %s139 = scalar_select %p136, %s137, %s138
      %p142 = pneg %p136
      %p143 = scmp.eq.s32.totalorder %s17, 1
      %p144 = por %p142, %p143
      %p145 = scmp.ne.s32.totalorder %s137, %s140
      %p146 = scmp.eq.s32.totalorder %s17, 0
      %p147 = por %p145, %p146
      %p148 = scmp.ne.s32.totalorder %s137, %s140
      %p149 = scmp.eq.s32.totalorder %s22, 1
      %p150 = por %p148, %p149
      %p151 = scmp.ne.s32.totalorder %s140, %s141
      %p152 = scmp.eq.s32.totalorder %s22, 0
      %p153 = por %p151, %p152
      %p154 = scmp.ne.s32.totalorder %s140, %s141
      %p155 = scmp.eq.s32.totalorder %s23, 1
      %p156 = por %p154, %p155
      %p158 = scmp.ne.s32.totalorder %s141, %s157
      %p159 = scmp.eq.s32.totalorder %s23, 0
      %p160 = por %p158, %p159
      %p161 = scmp.le.s32.totalorder 1, %s17
      %p162 = scmp.lt.s32.totalorder %s17, 3
      %p163 = pnand %p161, %p162
      %p164 = pneg %p163
      // Predicated region
      $region9: #{tpu_custom_call.1} parent=5 // pred_check
        _
      $region10: #{tpu_custom_call.1} parent=5 // pred_check_branch
        %166 = sbr.rel (%p163) target = $region12
      $region11: #{tpu_custom_call.1} parent=5 // pred_region
        %s167 = ssub.s32 %s17, 1
        // Predicated region
        $region13: #{tpu_custom_call.1} parent=11 // pred_check
          %p168 = pneg %p64
        $region14: #{tpu_custom_call.1} parent=11 // pred_check_branch
          %170 = sbr.rel (%p168) target = $region16
        $region15: #{tpu_custom_call.1} parent=11 // pred_region
          _
        $region16: #{tpu_custom_call.1} parent=11 // pred_fallthru
          _
        // Predicated region
        $region17: #{tpu_custom_call.1} parent=11 // pred_check
          %p171 = pneg %p85
        $region18: #{tpu_custom_call.1} parent=11 // pred_check_branch
          %173 = sbr.rel (%p171) target = $region20
        $region19: #{tpu_custom_call.1} parent=11 // pred_region
          _
        $region20: #{tpu_custom_call.1} parent=11 // pred_fallthru
          _
        // Predicated region
        $region21: #{tpu_custom_call.1} parent=11 // pred_check
          %p174 = pneg %p106
        $region22: #{tpu_custom_call.1} parent=11 // pred_check_branch
          %176 = sbr.rel (%p174) target = $region24
        $region23: #{tpu_custom_call.1} parent=11 // pred_region
          _
        $region24: #{tpu_custom_call.1} parent=11 // pred_fallthru
          _
        // Predicated region
        $region25: #{tpu_custom_call.1} parent=11 // pred_check
          %p177 = pneg %p127
        $region26: #{tpu_custom_call.1} parent=11 // pred_check_branch
          %179 = sbr.rel (%p177) target = $region28
        $region27: #{tpu_custom_call.1} parent=11 // pred_region
          _
        $region28: #{tpu_custom_call.1} parent=11 // pred_fallthru
          _
      $region12: #{tpu_custom_call.1} parent=5 // pred_fallthru
        _
      %p180 = scmp.lt.s32.totalorder %s17, 2
      // Predicated region
      $region29: #{tpu_custom_call.1} parent=5 // pred_check
        %p181 = pneg %p180
      $region30: #{tpu_custom_call.1} parent=5 // pred_check_branch
        %183 = sbr.rel (%p181) target = $region32
      $region31: #{tpu_custom_call.1} parent=5 // pred_region
        // Predicated region
        $region33: #{tpu_custom_call.1} parent=31 // pred_check
          %p184 = pneg %p37
        $region34: #{tpu_custom_call.1} parent=31 // pred_check_branch
          %186 = sbr.rel (%p184) target = $region36
        $region35: #{tpu_custom_call.1} parent=31 // pred_region
          %s187 = sand.u32 %s27, 1
          %s188 = scalar_lea.sflag [#allocation3], %s187
          %s189 = sand.u32 %s27, 1
          %s190 = smul.addr %s189, 256
          %s191 = scalar_lea.vmem [#allocation2], %s190
          %s192 = smul.u32 2, %s17
          %s194 = ssub.s32 4096, 4096
          %195 = vsyncadd %s188, %s194
          %s196 = smul.addr %s192, 16
          %s197 = smul.addr %s196, 128
          %s198 = scalar_lea.hbm %s0, %s197
          %s199 = sshll.u32 %s191, 4
          %s200 = int_to_ptr.vmem [resolvable:$true] %s199
          %205 = dma.hbm_to_vmem [thread:$0]  %s198, 4096, %s200, %s188, 256, 256, 16
        $region36: #{tpu_custom_call.1} parent=31 // pred_fallthru
          _
      $region32: #{tpu_custom_call.1} parent=5 // pred_fallthru
        _
      %p206 = scmp.le.s32.totalorder 1, %s17
      %p207 = scmp.lt.s32.totalorder %s17, 3
      %p208 = pnand %p206, %p207
      %p209 = pneg %p208
      // Predicated region
      $region37: #{tpu_custom_call.1} parent=5 // pred_check
        _
      $region38: #{tpu_custom_call.1} parent=5 // pred_check_branch
        %211 = sbr.rel (%p208) target = $region40
      $region39: #{tpu_custom_call.1} parent=5 // pred_region
        %s212 = ssub.s32 %s17, 1
        %s213 = sand.u32 %s30, 1
        %s214 = scalar_lea.sflag [#allocation3], %s213
        %s215 = sand.u32 %s30, 1
        %s216 = smul.addr %s215, 256
        %s217 = scalar_lea.vmem [#allocation2], %s216
        // Predicated region
        $region41: #{tpu_custom_call.1} parent=39 // pred_check
          %p218 = pneg %p43
        $region42: #{tpu_custom_call.1} parent=39 // pred_check_branch
          %220 = sbr.rel (%p218) target = $region44
        $region43: #{tpu_custom_call.1} parent=39 // pred_region
          %221 = dma.done %s214, 4096
        $region44: #{tpu_custom_call.1} parent=39 // pred_fallthru
          _
        %s222 = sand.u32 %s30, 1
        %s223 = scalar_lea.sflag [#allocation3], %s222
        %s224 = sand.u32 %s30, 1
        %s225 = smul.addr %s224, 256
        %s226 = scalar_lea.vmem [#allocation2], %s225
        %p227 = pneg %p43
        %p228 = pneg %p40
        %p229 = pneg %p64
        %p230 = pneg %p61
        %p231 = pneg %p85
        %p232 = pneg %p82
        %p233 = pneg %p106
        %p234 = pneg %p103
        %p235 = pneg %p127
        %p236 = pneg %p124
        %p237 = pneg %p153
        %p238 = pneg %p150
        %s239 = sand.u32 %s140, 1
        %s240 = scalar_lea.sflag [#allocation4], %s239
        %s241 = sand.u32 %s140, 1
        %s242 = smul.addr %s241, 256
        %s243 = scalar_lea.vmem [#allocation5], %s242
        %s244 = smul.u32 2, %s22
        %s245 = smul.u32 2, %s22
        %v246 = vld [vmem:[%s217] sm:$0xff]
        %v247 = vld [vmem:[%s217 + $0x8] sm:$0xff]
        %v248 = vld [vmem:[%s217 + $0x10] sm:$0xff]
        %v249 = vld [vmem:[%s217 + $0x18] sm:$0xff]
        %v250 = vld [vmem:[%s217 + $0x20] sm:$0xff]
        %v251 = vld [vmem:[%s217 + $0x28] sm:$0xff]
        %v252 = vld [vmem:[%s217 + $0x30] sm:$0xff]
        %v253 = vld [vmem:[%s217 + $0x38] sm:$0xff]
        %v254 = vld [vmem:[%s217 + $0x40] sm:$0xff]
        %v255 = vld [vmem:[%s217 + $0x48] sm:$0xff]
        %v256 = vld [vmem:[%s217 + $0x50] sm:$0xff]
        %v257 = vld [vmem:[%s217 + $0x58] sm:$0xff]
        %v258 = vld [vmem:[%s217 + $0x60] sm:$0xff]
        %v259 = vld [vmem:[%s217 + $0x68] sm:$0xff]
        %v260 = vld [vmem:[%s217 + $0x70] sm:$0xff]
        %v261 = vld [vmem:[%s217 + $0x78] sm:$0xff]
        %v262 = vadd.f32 %v246, %v247
        %263 = vadd.xlane.f32.xlu0 %v262
        %v264 = vpop.xlane.xlu0 %263
        %v265 = vadd.f32 %v248, %v249
        %266 = vadd.xlane.f32.xlu0 %v265
        %v267 = vpop.xlane.xlu0 %266
        %v268 = vadd.f32 %v250, %v251
        %269 = vadd.xlane.f32.xlu0 %v268
        %v270 = vpop.xlane.xlu0 %269
        %v271 = vadd.f32 %v252, %v253
        %272 = vadd.xlane.f32.xlu0 %v271
        %v273 = vpop.xlane.xlu0 %272
        %v274 = vadd.f32 %v254, %v255
        %275 = vadd.xlane.f32.xlu0 %v274
        %v276 = vpop.xlane.xlu0 %275
        %v277 = vadd.f32 %v256, %v257
        %278 = vadd.xlane.f32.xlu0 %v277
        %v279 = vpop.xlane.xlu0 %278
        %v280 = vadd.f32 %v258, %v259
        %281 = vadd.xlane.f32.xlu0 %v280
        %v282 = vpop.xlane.xlu0 %281
        %v283 = vadd.f32 %v260, %v261
        %284 = vadd.xlane.f32.xlu0 %v283
        %v285 = vpop.xlane.xlu0 %284
        %v286 = vrcp.pop 256.0
        %v287 = vmul.f32 %v264, %v286
        %v288 = vmul.f32 %v267, %v286
        %v289 = vmul.f32 %v270, %v286
        %v290 = vmul.f32 %v273, %v286
        %v291 = vmul.f32 %v276, %v286
        %v292 = vmul.f32 %v279, %v286
        %v293 = vmul.f32 %v282, %v286
        %v294 = vmul.f32 %v285, %v286
        %v295 = vld [vmem:[%s1] sm:$0xf]
        %v296 = vld [vmem:[%s2] sm:$0xf]
        %vm297 = vcmask 523264
        %v299 = vsel %vm297, %v295, 0
        %301 = vmatprep.subr.mxu0 0.0
        %302 = vmatpush1.msra.mxu0 %v287
        %303 = vmatprep.subr.mxu0 0.0
        %304 = vmatpush1.msra.mxu0 %v288
        %305 = vmatprep.subr.mxu0 0.0
        %306 = vmatpush1.msra.mxu0 %v289
        %307 = vmatprep.subr.mxu0 0.0
        %308 = vmatpush1.msra.mxu0 %v290
        %309 = vmatprep.subr.mxu0 0.0
        %310 = vmatpush1.msra.mxu0 %v291
        %311 = vmatprep.subr.mxu0 0.0
        %312 = vmatpush1.msra.mxu0 %v292
        %313 = vmatprep.subr.mxu0 0.0
        %314 = vmatpush1.msra.mxu0 %v293
        %315 = vmatprep.subr.mxu0 0.0
        %316 = vmatpush1.msra.mxu0 %v294
        %317 = vmatprep.subr.mxu0 0.0
        %318 = vmatpush1.msra.mxu0 0.0
        %319 = vmatprep.subr.mxu0 0.0
        %320 = vmatpush1.msra.mxu0 0.0
        %321 = vmatprep.subr.mxu0 0.0
        %322 = vmatpush1.msra.mxu0 0.0
        %323 = vmatprep.subr.mxu0 0.0
        %324 = vmatpush1.msra.mxu0 0.0
        %325 = vmatprep.subr.mxu0 0.0
        %326 = vmatpush1.msra.mxu0 0.0
        %327 = vmatprep.subr.mxu0 0.0
        %328 = vmatpush1.msra.mxu0 0.0
        %329 = vmatprep.subr.mxu0 0.0
        %330 = vmatpush1.msra.mxu0 0.0
        %331 = vmatprep.subr.mxu0 0.0
        %332 = vmatpush1.msra.mxu0 0.0
        %333 = vmatprep.subr.mxu0 0.0
        %334 = vmatpush1.msra.mxu0 0.0
        %335 = vmatprep.subr.mxu0 0.0
        %336 = vmatpush1.msra.mxu0 0.0
        %337 = vmatprep.subr.mxu0 0.0
        %338 = vmatpush1.msra.mxu0 0.0
        %339 = vmatprep.subr.mxu0 0.0
        %340 = vmatpush1.msra.mxu0 0.0
        %341 = vmatprep.subr.mxu0 0.0
        %342 = vmatpush1.msra.mxu0 0.0
        %343 = vmatprep.subr.mxu0 0.0
        %344 = vmatpush1.msra.mxu0 0.0
        %345 = vmatprep.subr.mxu0 0.0
        %346 = vmatpush1.msra.mxu0 0.0
        %347 = vmatprep.subr.mxu0 0.0
        %348 = vmatpush1.msra.mxu0 0.0
        %349 = vmatprep.subr.mxu0 0.0
        %350 = vmatpush1.msra.mxu0 0.0
        %351 = vmatprep.subr.mxu0 0.0
        %352 = vmatpush1.msra.mxu0 0.0
        %353 = vmatprep.subr.mxu0 0.0
        %354 = vmatpush1.msra.mxu0 0.0
        %355 = vmatprep.subr.mxu0 0.0
        %356 = vmatpush1.msra.mxu0 0.0
        %357 = vmatprep.subr.mxu0 0.0
        %358 = vmatpush1.msra.mxu0 0.0
        %359 = vmatprep.subr.mxu0 0.0
        %360 = vmatpush1.msra.mxu0 0.0
        %361 = vmatprep.subr.mxu0 0.0
        %362 = vmatpush1.msra.mxu0 0.0
        %363 = vmatprep.subr.mxu0 0.0
        %364 = vmatpush1.msra.mxu0 0.0
        %365 = vmatprep.mubr.f32.mxu0 0.0
        %366 = vmatmul.mubr.f32.gmra.mrb[0].mxu0 %v299
        %v367 = vpop.f32.mrb[0].mxu0
        %v368 = vadd.f32 %v296, %v367
        %v369 = vpop.f32.mrb[0].mxu0
        %370 = vdwg.mxu0
        %v371 = vsub.f32 0.0, %v368
        %v372 = vmul.f32 %v371, 1.442695
        %v373 = vpow.pop %v372
        %v374 = vadd.f32 %v373, 1.0
        %v375 = vrcp.pop %v374
        %v376 = vmul.f32 %v368, %v375
        %v377 = vld [vmem:[%s3] sm:$0xff]
        %v378 = vld [vmem:[%s3 + $0x8] sm:$0xff]
        %v379 = vld [vmem:[%s3 + $0x10] sm:$0xff]
        %v380 = vld [vmem:[%s3 + $0x18] sm:$0xff]
        %v381 = vld [vmem:[%s3 + $0x20] sm:$0xff]
        %v382 = vld [vmem:[%s3 + $0x28] sm:$0xff]
        %v383 = vld [vmem:[%s3 + $0x30] sm:$0xff]
        %v384 = vld [vmem:[%s3 + $0x38] sm:$0xff]
        %v385 = vld [vmem:[%s4] sm:$0xff]
        %v386 = vld [vmem:[%s4 + $0x8] sm:$0xff]
        %v387 = vld [vmem:[%s4 + $0x10] sm:$0xff]
        %v388 = vld [vmem:[%s4 + $0x18] sm:$0xff]
        %v389 = vld [vmem:[%s4 + $0x20] sm:$0xff]
        %v390 = vld [vmem:[%s4 + $0x28] sm:$0xff]
        %v391 = vld [vmem:[%s4 + $0x30] sm:$0xff]
        %v392 = vld [vmem:[%s4 + $0x38] sm:$0xff]
        %vm393 = vcmask 31744
        %v395 = vsel %vm393, %v377, 0
        %v398 = vsel %vm393, %v378, 0
        %v401 = vsel %vm393, %v379, 0
        %v404 = vsel %vm393, %v380, 0
        %v407 = vsel %vm393, %v381, 0
        %v410 = vsel %vm393, %v382, 0
        %v413 = vsel %vm393, %v383, 0
        %v416 = vsel %vm393, %v384, 0
        %vm418 = vcmask 1043456
        %v420 = vsel %vm418, %v376, 0
        %422 = vmatprep.subr.mxu0 0.0
        %423 = vmatpush1.msra.mxu0 %v420
        %424 = vmatprep.subr.mxu0 0.0
        %425 = vmatpush1.msra.mxu0 0.0
        %426 = vmatprep.subr.mxu0 0.0
        %427 = vmatpush1.msra.mxu0 0.0
        %428 = vmatprep.subr.mxu0 0.0
        %429 = vmatpush1.msra.mxu0 0.0
        %430 = vmatprep.subr.mxu0 0.0
        %431 = vmatpush1.msra.mxu0 0.0
        %432 = vmatprep.subr.mxu0 0.0
        %433 = vmatpush1.msra.mxu0 0.0
        %434 = vmatprep.subr.mxu0 0.0
        %435 = vmatpush1.msra.mxu0 0.0
        %436 = vmatprep.subr.mxu0 0.0
        %437 = vmatpush1.msra.mxu0 0.0
        %438 = vmatprep.subr.mxu0 0.0
        %439 = vmatpush1.msra.mxu0 0.0
        %440 = vmatprep.subr.mxu0 0.0
        %441 = vmatpush1.msra.mxu0 0.0
        %442 = vmatprep.subr.mxu0 0.0
        %443 = vmatpush1.msra.mxu0 0.0
        %444 = vmatprep.subr.mxu0 0.0
        %445 = vmatpush1.msra.mxu0 0.0
        %446 = vmatprep.subr.mxu0 0.0
        %447 = vmatpush1.msra.mxu0 0.0
        %448 = vmatprep.subr.mxu0 0.0
        %449 = vmatpush1.msra.mxu0 0.0
        %450 = vmatprep.subr.mxu0 0.0
        %451 = vmatpush1.msra.mxu0 0.0
        %452 = vmatprep.subr.mxu0 0.0
        %453 = vmatpush1.msra.mxu0 0.0
        %454 = vmatprep.subr.mxu0 0.0
        %455 = vmatpush1.msra.mxu0 0.0
        %456 = vmatprep.subr.mxu0 0.0
        %457 = vmatpush1.msra.mxu0 0.0
        %458 = vmatprep.subr.mxu0 0.0
        %459 = vmatpush1.msra.mxu0 0.0
        %460 = vmatprep.subr.mxu0 0.0
        %461 = vmatpush1.msra.mxu0 0.0
        %462 = vmatprep.subr.mxu0 0.0
        %463 = vmatpush1.msra.mxu0 0.0
        %464 = vmatprep.subr.mxu0 0.0
        %465 = vmatpush1.msra.mxu0 0.0
        %466 = vmatprep.subr.mxu0 0.0
        %467 = vmatpush1.msra.mxu0 0.0
        %468 = vmatprep.subr.mxu0 0.0
        %469 = vmatpush1.msra.mxu0 0.0
        %470 = vmatprep.subr.mxu0 0.0
        %471 = vmatpush1.msra.mxu0 0.0
        %472 = vmatprep.subr.mxu0 0.0
        %473 = vmatpush1.msra.mxu0 0.0
        %474 = vmatprep.subr.mxu0 0.0
        %475 = vmatpush1.msra.mxu0 0.0
        %476 = vmatprep.subr.mxu0 0.0
        %477 = vmatpush1.msra.mxu0 0.0
        %478 = vmatprep.subr.mxu0 0.0
        %479 = vmatpush1.msra.mxu0 0.0
        %480 = vmatprep.subr.mxu0 0.0
        %481 = vmatpush1.msra.mxu0 0.0
        %482 = vmatprep.subr.mxu0 0.0
        %483 = vmatpush1.msra.mxu0 0.0
        %484 = vmatprep.subr.mxu0 0.0
        %485 = vmatpush1.msra.mxu0 0.0
        %486 = vmatprep.mubr.f32.mxu0 0.0
        %487 = vmatmul.mubr.f32.gmra.mrb[0].mxu0 %v395
        %v488 = vpop.f32.mrb[0].mxu0
        %v489 = vadd.f32 %v385, %v488
        %v490 = vpop.f32.mrb[0].mxu0
        %491 = vmatprep.mubr.f32.mxu0 0.0
        %492 = vmatmul.mubr.f32.gmra.mrb[0].mxu0 %v398
        %v493 = vpop.f32.mrb[0].mxu0
        %v494 = vadd.f32 %v386, %v493
        %v495 = vpop.f32.mrb[0].mxu0
        %496 = vmatprep.mubr.f32.mxu0 0.0
        %497 = vmatmul.mubr.f32.gmra.mrb[0].mxu0 %v401
        %v498 = vpop.f32.mrb[0].mxu0
        %v499 = vadd.f32 %v387, %v498
        %v500 = vpop.f32.mrb[0].mxu0
        %501 = vmatprep.mubr.f32.mxu0 0.0
        %502 = vmatmul.mubr.f32.gmra.mrb[0].mxu0 %v404
        %v503 = vpop.f32.mrb[0].mxu0
        %v504 = vadd.f32 %v388, %v503
        %v505 = vpop.f32.mrb[0].mxu0
        %506 = vmatprep.mubr.f32.mxu0 0.0
        %507 = vmatmul.mubr.f32.gmra.mrb[0].mxu0 %v407
        %v508 = vpop.f32.mrb[0].mxu0
        %v509 = vadd.f32 %v389, %v508
        %v510 = vpop.f32.mrb[0].mxu0
        %511 = vmatprep.mubr.f32.mxu0 0.0
        %512 = vmatmul.mubr.f32.gmra.mrb[0].mxu0 %v410
        %v513 = vpop.f32.mrb[0].mxu0
        %v514 = vadd.f32 %v390, %v513
        %v515 = vpop.f32.mrb[0].mxu0
        %516 = vmatprep.mubr.f32.mxu0 0.0
        %517 = vmatmul.mubr.f32.gmra.mrb[0].mxu0 %v413
        %v518 = vpop.f32.mrb[0].mxu0
        %v519 = vadd.f32 %v391, %v518
        %v520 = vpop.f32.mrb[0].mxu0
        %521 = vmatprep.mubr.f32.mxu0 0.0
        %522 = vmatmul.mubr.f32.gmra.mrb[0].mxu0 %v416
        %v523 = vpop.f32.mrb[0].mxu0
        %v524 = vadd.f32 %v392, %v523
        %v525 = vpop.f32.mrb[0].mxu0
        %526 = vdwg.mxu0
        %v527 = vsub.f32 0.0, %v489
        %v528 = vsub.f32 0.0, %v494
        %v529 = vsub.f32 0.0, %v499
        %v530 = vsub.f32 0.0, %v504
        %v531 = vsub.f32 0.0, %v509
        %v532 = vsub.f32 0.0, %v514
        %v533 = vsub.f32 0.0, %v519
        %v534 = vsub.f32 0.0, %v524
        %v535 = vmul.f32 %v527, 1.442695
        %v536 = vpow.pop %v535
        %v537 = vmul.f32 %v528, 1.442695
        %v538 = vpow.pop %v537
        %v539 = vmul.f32 %v529, 1.442695
        %v540 = vpow.pop %v539
        %v541 = vmul.f32 %v530, 1.442695
        %v542 = vpow.pop %v541
        %v543 = vmul.f32 %v531, 1.442695
        %v544 = vpow.pop %v543
        %v545 = vmul.f32 %v532, 1.442695
        %v546 = vpow.pop %v545
        %v547 = vmul.f32 %v533, 1.442695
        %v548 = vpow.pop %v547
        %v549 = vmul.f32 %v534, 1.442695
        %v550 = vpow.pop %v549
        %v551 = vadd.f32 %v536, 1.0
        %v552 = vadd.f32 %v538, 1.0
        %v553 = vadd.f32 %v540, 1.0
        %v554 = vadd.f32 %v542, 1.0
        %v555 = vadd.f32 %v544, 1.0
        %v556 = vadd.f32 %v546, 1.0
        %v557 = vadd.f32 %v548, 1.0
        %v558 = vadd.f32 %v550, 1.0
        %v559 = vrcp.pop %v551
        %v560 = vrcp.pop %v552
        %v561 = vrcp.pop %v553
        %v562 = vrcp.pop %v554
        %v563 = vrcp.pop %v555
        %v564 = vrcp.pop %v556
        %v565 = vrcp.pop %v557
        %v566 = vrcp.pop %v558
        %568 = vset.pattern.permute.xlu0 0
        %569 = vperm.xlu0 %568, %v559
        %v570 = vpop.permute.xlu0 %569
        %573 = vset.pattern.permute.xlu0 0
        %574 = vperm.xlu0 %573, %v560
        %v575 = vpop.permute.xlu0 %574
        %578 = vset.pattern.permute.xlu0 0
        %579 = vperm.xlu0 %578, %v561
        %v580 = vpop.permute.xlu0 %579
        %583 = vset.pattern.permute.xlu0 0
        %584 = vperm.xlu0 %583, %v562
        %v585 = vpop.permute.xlu0 %584
        %588 = vset.pattern.permute.xlu0 0
        %589 = vperm.xlu0 %588, %v563
        %v590 = vpop.permute.xlu0 %589
        %593 = vset.pattern.permute.xlu0 0
        %594 = vperm.xlu0 %593, %v564
        %v595 = vpop.permute.xlu0 %594
        %598 = vset.pattern.permute.xlu0 0
        %599 = vperm.xlu0 %598, %v565
        %v600 = vpop.permute.xlu0 %599
        %603 = vset.pattern.permute.xlu0 0
        %604 = vperm.xlu0 %603, %v566
        %v605 = vpop.permute.xlu0 %604
        %v607 = vmul.f32 %v246, %v570
        %v608 = vmul.f32 %v247, %v570
        %v609 = vmul.f32 %v248, %v575
        %v610 = vmul.f32 %v249, %v575
        %v611 = vmul.f32 %v250, %v580
        %v612 = vmul.f32 %v251, %v580
        %v613 = vmul.f32 %v252, %v585
        %v614 = vmul.f32 %v253, %v585
        %v615 = vmul.f32 %v254, %v590
        %v616 = vmul.f32 %v255, %v590
        %v617 = vmul.f32 %v256, %v595
        %v618 = vmul.f32 %v257, %v595
        %v619 = vmul.f32 %v258, %v600
        %v620 = vmul.f32 %v259, %v600
        %v621 = vmul.f32 %v260, %v605
        %v622 = vmul.f32 %v261, %v605
        %623 = vst [vmem:[%s243] sm:$0xff] %v607
        %624 = vst [vmem:[%s243 + $0x8] sm:$0xff] %v608
        %625 = vst [vmem:[%s243 + $0x10] sm:$0xff] %v609
        %626 = vst [vmem:[%s243 + $0x18] sm:$0xff] %v610
        %627 = vst [vmem:[%s243 + $0x20] sm:$0xff] %v611
        %628 = vst [vmem:[%s243 + $0x28] sm:$0xff] %v612
        %629 = vst [vmem:[%s243 + $0x30] sm:$0xff] %v613
        %630 = vst [vmem:[%s243 + $0x38] sm:$0xff] %v614
        %631 = vst [vmem:[%s243 + $0x40] sm:$0xff] %v615
        %632 = vst [vmem:[%s243 + $0x48] sm:$0xff] %v616
        %633 = vst [vmem:[%s243 + $0x50] sm:$0xff] %v617
        %634 = vst [vmem:[%s243 + $0x58] sm:$0xff] %v618
        %635 = vst [vmem:[%s243 + $0x60] sm:$0xff] %v619
        %636 = vst [vmem:[%s243 + $0x68] sm:$0xff] %v620
        %637 = vst [vmem:[%s243 + $0x70] sm:$0xff] %v621
        %638 = vst [vmem:[%s243 + $0x78] sm:$0xff] %v622
        %s639 = scalar_lea.vmem %s217, 128 [#allocation2]
        %v640 = vld [vmem:[%s639] sm:$0xff]
        %v641 = vld [vmem:[%s639 + $0x8] sm:$0xff]
        %v642 = vld [vmem:[%s639 + $0x10] sm:$0xff]
        %v643 = vld [vmem:[%s639 + $0x18] sm:$0xff]
        %v644 = vld [vmem:[%s639 + $0x20] sm:$0xff]
        %v645 = vld [vmem:[%s639 + $0x28] sm:$0xff]
        %v646 = vld [vmem:[%s639 + $0x30] sm:$0xff]
        %v647 = vld [vmem:[%s639 + $0x38] sm:$0xff]
        %v648 = vld [vmem:[%s639 + $0x40] sm:$0xff]
        %v649 = vld [vmem:[%s639 + $0x48] sm:$0xff]
        %v650 = vld [vmem:[%s639 + $0x50] sm:$0xff]
        %v651 = vld [vmem:[%s639 + $0x58] sm:$0xff]
        %v652 = vld [vmem:[%s639 + $0x60] sm:$0xff]
        %v653 = vld [vmem:[%s639 + $0x68] sm:$0xff]
        %v654 = vld [vmem:[%s639 + $0x70] sm:$0xff]
        %v655 = vld [vmem:[%s639 + $0x78] sm:$0xff]
        %v656 = vadd.f32 %v640, %v641
        %657 = vadd.xlane.f32.xlu0 %v656
        %v658 = vpop.xlane.xlu0 %657
        %v659 = vadd.f32 %v642, %v643
        %660 = vadd.xlane.f32.xlu0 %v659
        %v661 = vpop.xlane.xlu0 %660
        %v662 = vadd.f32 %v644, %v645
        %663 = vadd.xlane.f32.xlu0 %v662
        %v664 = vpop.xlane.xlu0 %663
        %v665 = vadd.f32 %v646, %v647
        %666 = vadd.xlane.f32.xlu0 %v665
        %v667 = vpop.xlane.xlu0 %666
        %v668 = vadd.f32 %v648, %v649
        %669 = vadd.xlane.f32.xlu0 %v668
        %v670 = vpop.xlane.xlu0 %669
        %v671 = vadd.f32 %v650, %v651
        %672 = vadd.xlane.f32.xlu0 %v671
        %v673 = vpop.xlane.xlu0 %672
        %v674 = vadd.f32 %v652, %v653
        %675 = vadd.xlane.f32.xlu0 %v674
        %v676 = vpop.xlane.xlu0 %675
        %v677 = vadd.f32 %v654, %v655
        %678 = vadd.xlane.f32.xlu0 %v677
        %v679 = vpop.xlane.xlu0 %678
        %v680 = vmul.f32 %v658, %v286
        %v681 = vmul.f32 %v661, %v286
        %v682 = vmul.f32 %v664, %v286
        %v683 = vmul.f32 %v667, %v286
        %v684 = vmul.f32 %v670, %v286
        %v685 = vmul.f32 %v673, %v286
        %v686 = vmul.f32 %v676, %v286
        %v687 = vmul.f32 %v679, %v286
        %v688 = vld [vmem:[%s1] sm:$0xf]
        %v689 = vld [vmem:[%s2] sm:$0xf]
        %v691 = vsel %vm297, %v688, 0
        %693 = vmatprep.subr.mxu0 0.0
        %694 = vmatpush1.msra.mxu0 %v680
        %695 = vmatprep.subr.mxu0 0.0
        %696 = vmatpush1.msra.mxu0 %v681
        %697 = vmatprep.subr.mxu0 0.0
        %698 = vmatpush1.msra.mxu0 %v682
        %699 = vmatprep.subr.mxu0 0.0
        %700 = vmatpush1.msra.mxu0 %v683
        %701 = vmatprep.subr.mxu0 0.0
        %702 = vmatpush1.msra.mxu0 %v684
        %703 = vmatprep.subr.mxu0 0.0
        %704 = vmatpush1.msra.mxu0 %v685
        %705 = vmatprep.subr.mxu0 0.0
        %706 = vmatpush1.msra.mxu0 %v686
        %707 = vmatprep.subr.mxu0 0.0
        %708 = vmatpush1.msra.mxu0 %v687
        %709 = vmatprep.subr.mxu0 0.0
        %710 = vmatpush1.msra.mxu0 0.0
        %711 = vmatprep.subr.mxu0 0.0
        %712 = vmatpush1.msra.mxu0 0.0
        %713 = vmatprep.subr.mxu0 0.0
        %714 = vmatpush1.msra.mxu0 0.0
        %715 = vmatprep.subr.mxu0 0.0
        %716 = vmatpush1.msra.mxu0 0.0
        %717 = vmatprep.subr.mxu0 0.0
        %718 = vmatpush1.msra.mxu0 0.0
        %719 = vmatprep.subr.mxu0 0.0
        %720 = vmatpush1.msra.mxu0 0.0
        %721 = vmatprep.subr.mxu0 0.0
        %722 = vmatpush1.msra.mxu0 0.0
        %723 = vmatprep.subr.mxu0 0.0
        %724 = vmatpush1.msra.mxu0 0.0
        %725 = vmatprep.subr.mxu0 0.0
        %726 = vmatpush1.msra.mxu0 0.0
        %727 = vmatprep.subr.mxu0 0.0
        %728 = vmatpush1.msra.mxu0 0.0
        %729 = vmatprep.subr.mxu0 0.0
        %730 = vmatpush1.msra.mxu0 0.0
        %731 = vmatprep.subr.mxu0 0.0
        %732 = vmatpush1.msra.mxu0 0.0
        %733 = vmatprep.subr.mxu0 0.0
        %734 = vmatpush1.msra.mxu0 0.0
        %735 = vmatprep.subr.mxu0 0.0
        %736 = vmatpush1.msra.mxu0 0.0
        %737 = vmatprep.subr.mxu0 0.0
        %738 = vmatpush1.msra.mxu0 0.0
        %739 = vmatprep.subr.mxu0 0.0
        %740 = vmatpush1.msra.mxu0 0.0
        %741 = vmatprep.subr.mxu0 0.0
        %742 = vmatpush1.msra.mxu0 0.0
        %743 = vmatprep.subr.mxu0 0.0
        %744 = vmatpush1.msra.mxu0 0.0
        %745 = vmatprep.subr.mxu0 0.0
        %746 = vmatpush1.msra.mxu0 0.0
        %747 = vmatprep.subr.mxu0 0.0
        %748 = vmatpush1.msra.mxu0 0.0
        %749 = vmatprep.subr.mxu0 0.0
        %750 = vmatpush1.msra.mxu0 0.0
        %751 = vmatprep.subr.mxu0 0.0
        %752 = vmatpush1.msra.mxu0 0.0
        %753 = vmatprep.subr.mxu0 0.0
        %754 = vmatpush1.msra.mxu0 0.0
        %755 = vmatprep.subr.mxu0 0.0
        %756 = vmatpush1.msra.mxu0 0.0
        %757 = vmatprep.mubr.f32.mxu0 0.0
        %758 = vmatmul.mubr.f32.gmra.mrb[0].mxu0 %v691
        %v759 = vpop.f32.mrb[0].mxu0
        %v760 = vadd.f32 %v689, %v759
        %v761 = vpop.f32.mrb[0].mxu0
        %762 = vdwg.mxu0
        %v763 = vsub.f32 0.0, %v760
        %v764 = vmul.f32 %v763, 1.442695
        %v765 = vpow.pop %v764
        %v766 = vadd.f32 %v765, 1.0
        %v767 = vrcp.pop %v766
        %v768 = vmul.f32 %v760, %v767
        %v769 = vld [vmem:[%s3] sm:$0xff]
        %v770 = vld [vmem:[%s3 + $0x8] sm:$0xff]
        %v771 = vld [vmem:[%s3 + $0x10] sm:$0xff]
        %v772 = vld [vmem:[%s3 + $0x18] sm:$0xff]
        %v773 = vld [vmem:[%s3 + $0x20] sm:$0xff]
        %v774 = vld [vmem:[%s3 + $0x28] sm:$0xff]
        %v775 = vld [vmem:[%s3 + $0x30] sm:$0xff]
        %v776 = vld [vmem:[%s3 + $0x38] sm:$0xff]
        %v777 = vld [vmem:[%s4] sm:$0xff]
        %v778 = vld [vmem:[%s4 + $0x8] sm:$0xff]
        %v779 = vld [vmem:[%s4 + $0x10] sm:$0xff]
        %v780 = vld [vmem:[%s4 + $0x18] sm:$0xff]
        %v781 = vld [vmem:[%s4 + $0x20] sm:$0xff]
        %v782 = vld [vmem:[%s4 + $0x28] sm:$0xff]
        %v783 = vld [vmem:[%s4 + $0x30] sm:$0xff]
        %v784 = vld [vmem:[%s4 + $0x38] sm:$0xff]
        %v786 = vsel %vm393, %v769, 0
        %v789 = vsel %vm393, %v770, 0
        %v792 = vsel %vm393, %v771, 0
        %v795 = vsel %vm393, %v772, 0
        %v798 = vsel %vm393, %v773, 0
        %v801 = vsel %vm393, %v774, 0
        %v804 = vsel %vm393, %v775, 0
        %v807 = vsel %vm393, %v776, 0
        %v810 = vsel %vm418, %v768, 0
        %812 = vmatprep.subr.mxu0 0.0
        %813 = vmatpush1.msra.mxu0 %v810
        %814 = vmatprep.subr.mxu0 0.0
        %815 = vmatpush1.msra.mxu0 0.0
        %816 = vmatprep.subr.mxu0 0.0
        %817 = vmatpush1.msra.mxu0 0.0
        %818 = vmatprep.subr.mxu0 0.0
        %819 = vmatpush1.msra.mxu0 0.0
        %820 = vmatprep.subr.mxu0 0.0
        %821 = vmatpush1.msra.mxu0 0.0
        %822 = vmatprep.subr.mxu0 0.0
        %823 = vmatpush1.msra.mxu0 0.0
        %824 = vmatprep.subr.mxu0 0.0
        %825 = vmatpush1.msra.mxu0 0.0
        %826 = vmatprep.subr.mxu0 0.0
        %827 = vmatpush1.msra.mxu0 0.0
        %828 = vmatprep.subr.mxu0 0.0
        %829 = vmatpush1.msra.mxu0 0.0
        %830 = vmatprep.subr.mxu0 0.0
        %831 = vmatpush1.msra.mxu0 0.0
        %832 = vmatprep.subr.mxu0 0.0
        %833 = vmatpush1.msra.mxu0 0.0
        %834 = vmatprep.subr.mxu0 0.0
        %835 = vmatpush1.msra.mxu0 0.0
        %836 = vmatprep.subr.mxu0 0.0
        %837 = vmatpush1.msra.mxu0 0.0
        %838 = vmatprep.subr.mxu0 0.0
        %839 = vmatpush1.msra.mxu0 0.0
        %840 = vmatprep.subr.mxu0 0.0
        %841 = vmatpush1.msra.mxu0 0.0
        %842 = vmatprep.subr.mxu0 0.0
        %843 = vmatpush1.msra.mxu0 0.0
        %844 = vmatprep.subr.mxu0 0.0
        %845 = vmatpush1.msra.mxu0 0.0
        %846 = vmatprep.subr.mxu0 0.0
        %847 = vmatpush1.msra.mxu0 0.0
        %848 = vmatprep.subr.mxu0 0.0
        %849 = vmatpush1.msra.mxu0 0.0
        %850 = vmatprep.subr.mxu0 0.0
        %851 = vmatpush1.msra.mxu0 0.0
        %852 = vmatprep.subr.mxu0 0.0
        %853 = vmatpush1.msra.mxu0 0.0
        %854 = vmatprep.subr.mxu0 0.0
        %855 = vmatpush1.msra.mxu0 0.0
        %856 = vmatprep.subr.mxu0 0.0
        %857 = vmatpush1.msra.mxu0 0.0
        %858 = vmatprep.subr.mxu0 0.0
        %859 = vmatpush1.msra.mxu0 0.0
        %860 = vmatprep.subr.mxu0 0.0
        %861 = vmatpush1.msra.mxu0 0.0
        %862 = vmatprep.subr.mxu0 0.0
        %863 = vmatpush1.msra.mxu0 0.0
        %864 = vmatprep.subr.mxu0 0.0
        %865 = vmatpush1.msra.mxu0 0.0
        %866 = vmatprep.subr.mxu0 0.0
        %867 = vmatpush1.msra.mxu0 0.0
        %868 = vmatprep.subr.mxu0 0.0
        %869 = vmatpush1.msra.mxu0 0.0
        %870 = vmatprep.subr.mxu0 0.0
        %871 = vmatpush1.msra.mxu0 0.0
        %872 = vmatprep.subr.mxu0 0.0
        %873 = vmatpush1.msra.mxu0 0.0
        %874 = vmatprep.subr.mxu0 0.0
        %875 = vmatpush1.msra.mxu0 0.0
        %876 = vmatprep.mubr.f32.mxu0 0.0
        %877 = vmatmul.mubr.f32.gmra.mrb[0].mxu0 %v786
        %v878 = vpop.f32.mrb[0].mxu0
        %v879 = vadd.f32 %v777, %v878
        %v880 = vpop.f32.mrb[0].mxu0
        %881 = vmatprep.mubr.f32.mxu0 0.0
        %882 = vmatmul.mubr.f32.gmra.mrb[0].mxu0 %v789
        %v883 = vpop.f32.mrb[0].mxu0
        %v884 = vadd.f32 %v778, %v883
        %v885 = vpop.f32.mrb[0].mxu0
        %886 = vmatprep.mubr.f32.mxu0 0.0
        %887 = vmatmul.mubr.f32.gmra.mrb[0].mxu0 %v792
        %v888 = vpop.f32.mrb[0].mxu0
        %v889 = vadd.f32 %v779, %v888
        %v890 = vpop.f32.mrb[0].mxu0
        %891 = vmatprep.mubr.f32.mxu0 0.0
        %892 = vmatmul.mubr.f32.gmra.mrb[0].mxu0 %v795
        %v893 = vpop.f32.mrb[0].mxu0
        %v894 = vadd.f32 %v780, %v893
        %v895 = vpop.f32.mrb[0].mxu0
        %896 = vmatprep.mubr.f32.mxu0 0.0
        %897 = vmatmul.mubr.f32.gmra.mrb[0].mxu0 %v798
        %v898 = vpop.f32.mrb[0].mxu0
        %v899 = vadd.f32 %v781, %v898
        %v900 = vpop.f32.mrb[0].mxu0
        %901 = vmatprep.mubr.f32.mxu0 0.0
        %902 = vmatmul.mubr.f32.gmra.mrb[0].mxu0 %v801
        %v903 = vpop.f32.mrb[0].mxu0
        %v904 = vadd.f32 %v782, %v903
        %v905 = vpop.f32.mrb[0].mxu0
        %906 = vmatprep.mubr.f32.mxu0 0.0
        %907 = vmatmul.mubr.f32.gmra.mrb[0].mxu0 %v804
        %v908 = vpop.f32.mrb[0].mxu0
        %v909 = vadd.f32 %v783, %v908
        %v910 = vpop.f32.mrb[0].mxu0
        %911 = vmatprep.mubr.f32.mxu0 0.0
        %912 = vmatmul.mubr.f32.gmra.mrb[0].mxu0 %v807
        %v913 = vpop.f32.mrb[0].mxu0
        %v914 = vadd.f32 %v784, %v913
        %v915 = vpop.f32.mrb[0].mxu0
        %916 = vdwg.mxu0
        %v917 = vsub.f32 0.0, %v879
        %v918 = vsub.f32 0.0, %v884
        %v919 = vsub.f32 0.0, %v889
        %v920 = vsub.f32 0.0, %v894
        %v921 = vsub.f32 0.0, %v899
        %v922 = vsub.f32 0.0, %v904
        %v923 = vsub.f32 0.0, %v909
        %v924 = vsub.f32 0.0, %v914
        %v925 = vmul.f32 %v917, 1.442695
        %v926 = vpow.pop %v925
        %v927 = vmul.f32 %v918, 1.442695
        %v928 = vpow.pop %v927
        %v929 = vmul.f32 %v919, 1.442695
        %v930 = vpow.pop %v929
        %v931 = vmul.f32 %v920, 1.442695
        %v932 = vpow.pop %v931
        %v933 = vmul.f32 %v921, 1.442695
        %v934 = vpow.pop %v933
        %v935 = vmul.f32 %v922, 1.442695
        %v936 = vpow.pop %v935
        %v937 = vmul.f32 %v923, 1.442695
        %v938 = vpow.pop %v937
        %v939 = vmul.f32 %v924, 1.442695
        %v940 = vpow.pop %v939
        %v941 = vadd.f32 %v926, 1.0
        %v942 = vadd.f32 %v928, 1.0
        %v943 = vadd.f32 %v930, 1.0
        %v944 = vadd.f32 %v932, 1.0
        %v945 = vadd.f32 %v934, 1.0
        %v946 = vadd.f32 %v936, 1.0
        %v947 = vadd.f32 %v938, 1.0
        %v948 = vadd.f32 %v940, 1.0
        %v949 = vrcp.pop %v941
        %v950 = vrcp.pop %v942
        %v951 = vrcp.pop %v943
        %v952 = vrcp.pop %v944
        %v953 = vrcp.pop %v945
        %v954 = vrcp.pop %v946
        %v955 = vrcp.pop %v947
        %v956 = vrcp.pop %v948
        %958 = vset.pattern.permute.xlu0 0
        %959 = vperm.xlu0 %958, %v949
        %v960 = vpop.permute.xlu0 %959
        %963 = vset.pattern.permute.xlu0 0
        %964 = vperm.xlu0 %963, %v950
        %v965 = vpop.permute.xlu0 %964
        %968 = vset.pattern.permute.xlu0 0
        %969 = vperm.xlu0 %968, %v951
        %v970 = vpop.permute.xlu0 %969
        %973 = vset.pattern.permute.xlu0 0
        %974 = vperm.xlu0 %973, %v952
        %v975 = vpop.permute.xlu0 %974
        %978 = vset.pattern.permute.xlu0 0
        %979 = vperm.xlu0 %978, %v953
        %v980 = vpop.permute.xlu0 %979
        %983 = vset.pattern.permute.xlu0 0
        %984 = vperm.xlu0 %983, %v954
        %v985 = vpop.permute.xlu0 %984
        %988 = vset.pattern.permute.xlu0 0
        %989 = vperm.xlu0 %988, %v955
        %v990 = vpop.permute.xlu0 %989
        %993 = vset.pattern.permute.xlu0 0
        %994 = vperm.xlu0 %993, %v956
        %v995 = vpop.permute.xlu0 %994
        %v997 = vmul.f32 %v640, %v960
        %v998 = vmul.f32 %v641, %v960
        %v999 = vmul.f32 %v642, %v965
        %v1000 = vmul.f32 %v643, %v965
        %v1001 = vmul.f32 %v644, %v970
        %v1002 = vmul.f32 %v645, %v970
        %v1003 = vmul.f32 %v646, %v975
        %v1004 = vmul.f32 %v647, %v975
        %v1005 = vmul.f32 %v648, %v980
        %v1006 = vmul.f32 %v649, %v980
        %v1007 = vmul.f32 %v650, %v985
        %v1008 = vmul.f32 %v651, %v985
        %v1009 = vmul.f32 %v652, %v990
        %v1010 = vmul.f32 %v653, %v990
        %v1011 = vmul.f32 %v654, %v995
        %v1012 = vmul.f32 %v655, %v995
        %s1013 = scalar_lea.vmem %s243, 128 [#allocation5]
        %1014 = vst [vmem:[%s1013] sm:$0xff] %v997
        %1015 = vst [vmem:[%s1013 + $0x8] sm:$0xff] %v998
        %1016 = vst [vmem:[%s1013 + $0x10] sm:$0xff] %v999
        %1017 = vst [vmem:[%s1013 + $0x18] sm:$0xff] %v1000
        %1018 = vst [vmem:[%s1013 + $0x20] sm:$0xff] %v1001
        %1019 = vst [vmem:[%s1013 + $0x28] sm:$0xff] %v1002
        %1020 = vst [vmem:[%s1013 + $0x30] sm:$0xff] %v1003
        %1021 = vst [vmem:[%s1013 + $0x38] sm:$0xff] %v1004
        %1022 = vst [vmem:[%s1013 + $0x40] sm:$0xff] %v1005
        %1023 = vst [vmem:[%s1013 + $0x48] sm:$0xff] %v1006
        %1024 = vst [vmem:[%s1013 + $0x50] sm:$0xff] %v1007
        %1025 = vst [vmem:[%s1013 + $0x58] sm:$0xff] %v1008
        %1026 = vst [vmem:[%s1013 + $0x60] sm:$0xff] %v1009
        %1027 = vst [vmem:[%s1013 + $0x68] sm:$0xff] %v1010
        %1028 = vst [vmem:[%s1013 + $0x70] sm:$0xff] %v1011
        %1029 = vst [vmem:[%s1013 + $0x78] sm:$0xff] %v1012
        %s1030 = sand.u32 %s140, 1
        %s1031 = scalar_lea.sflag [#allocation4], %s1030
        %s1032 = sand.u32 %s140, 1
        %s1033 = smul.addr %s1032, 256
        %s1034 = scalar_lea.vmem [#allocation5], %s1033
        // Predicated region
        $region45: #{tpu_custom_call.1} parent=39 // pred_check
          %p1035 = pneg %p150
        $region46: #{tpu_custom_call.1} parent=39 // pred_check_branch
          %1037 = sbr.rel (%p1035) target = $region48
        $region47: #{tpu_custom_call.1} parent=39 // pred_region
          %s1038 = smul.u32 2, %s22
          %s1040 = ssub.s32 4096, 4096
          %1041 = vsyncadd %s1031, %s1040
          %s1042 = smul.addr %s1038, 16
          %s1043 = smul.addr %s1042, 128
          %s1044 = scalar_lea.hbm %s5, %s1043
          %s1045 = sshll.u32 %s1034, 4
          %s1046 = int_to_ptr.vmem [resolvable:$true] %s1045
          %1051 = dma.vmem_to_hbm [thread:$0]  %s1046, 4096, %s1044, %s1031, 256, 256, 16
        $region48: #{tpu_custom_call.1} parent=39 // pred_fallthru
          _
      $region40: #{tpu_custom_call.1} parent=5 // pred_fallthru
        _
      %p1052 = scmp.le.s32.totalorder 2, %s17
      // Predicated region
      $region49: #{tpu_custom_call.1} parent=5 // pred_check
        %p1053 = pneg %p1052
      $region50: #{tpu_custom_call.1} parent=5 // pred_check_branch
        %1055 = sbr.rel (%p1053) target = $region52
      $region51: #{tpu_custom_call.1} parent=5 // pred_region
        %s1056 = ssub.s32 %s17, 2
        // Predicated region
        $region53: #{tpu_custom_call.1} parent=51 // pred_check
          %p1057 = pneg %p156
        $region54: #{tpu_custom_call.1} parent=51 // pred_check_branch
          %1059 = sbr.rel (%p1057) target = $region56
        $region55: #{tpu_custom_call.1} parent=51 // pred_region
          %s1060 = sand.u32 %s141, 1
          %s1061 = scalar_lea.sflag [#allocation4], %s1060
          %s1062 = sand.u32 %s141, 1
          %s1063 = smul.addr %s1062, 256
          %s1064 = scalar_lea.vmem [#allocation5], %s1063
          %1065 = dma.done %s1061, 4096
        $region56: #{tpu_custom_call.1} parent=51 // pred_fallthru
          _
      $region52: #{tpu_custom_call.1} parent=5 // pred_fallthru
        _
    $region6: #{tpu_custom_call.1} parent=1 // loop_footer
      %s21 = sadd.s32 1, %s17
    $region7: #{tpu_custom_call.1} parent=1 // loop_footer_branch
      %16 = sbr.rel target = $region3
    $region8: #{tpu_custom_call.1} parent=1 // loop_exit
      _
    %1066 = vsyncpa [#allocation3], 1
    %s1067 = scalar_lea.sflag [#allocation3], 1
    %1068 = vsyncpa %s1067, 1
    %1069 = vsyncpa [#allocation4], 1
    %s1070 = scalar_lea.sflag [#allocation4], 1
    %1071 = vsyncpa %s1070, 1

</llo_original>
